<compile_context>
chip_gen: v5e
topology: v5e:2x2
jax: 0.10.0
libtpu: 0.0.40
codegen_flags: <defaults>
</compile_context>

<pallas_src>
import numpy as np
import jax
import jax.numpy as jnp
from jax.experimental import pallas as pl
from jax.experimental.pallas import tpu as pltpu


def _sobel_weights():
    # Matches the PyTorch module's fixed parameters (used only by the
    # plain-JAX reference; the kernel has the weights constant-folded).
    edge_kx = np.array([[1, 0, -1], [2, 0, -2], [1, 0, -1]], dtype=np.float32)
    edge_ky = np.array([[1, 2, 1], [0, 0, 0], [-1, -2, -1]], dtype=np.float32)
    edge_k = np.stack((edge_kx, edge_ky)).reshape(2, 1, 3, 3)
    return jnp.asarray(edge_k, dtype=jnp.float32)


def _round_up(x, m):
    return ((x + m - 1) // m) * m


def _vmem_budget():
    """(input-tile byte budget, vmem_limit_bytes), generation-aware."""
    try:
        info = pltpu.get_tpu_info()
        cap = int(getattr(info, "vmem_capacity_bytes", 64 << 20))
    except Exception:
        cap = 64 << 20  # conservative (v7x-sized) default
    tile_budget = (4 << 20) if cap >= (100 << 20) else (2 << 20)
    vmem_limit = int(min(96 << 20, cap * 3 // 4))
    return tile_budget, vmem_limit


def _plan_tiles(N, H, W_pad, budget_bytes):
    """Row-tile TH (multiple of 8) and tile count RT = cdiv-ish split of H."""
    # Largest multiple-of-8 row count whose f32 tile fits the budget.
    th_cap = max(8, (budget_bytes // (W_pad * 4)) // 8 * 8)
    th_cap = min(th_cap, _round_up(H, 8))
    rt = max(1, -(-H // th_cap))
    # Keep both v7x TensorCores busy: guarantee >= 2 grid steps when possible.
    if N * rt < 2 and H > 8:
        rt = 2
    th = _round_up(-(-H // rt), 8)
    return th, rt


def _sobel_kernel(x_ref, halo_ref, o_ref):
    # x_ref:    VMEM (1, TH, W)    -- row tile of the single-channel image.
    # halo_ref: VMEM (1, 1, 2, W)  -- [row above tile, row below tile],
    #                                 zeros at the image border.
    # o_ref:    VMEM (1, 2, TH, W) -- [Gx, Gy] for this row tile.
    TH = x_ref.shape[1]
    W = x_ref.shape[2]

    x = x_ref[0].astype(jnp.float32)            # (TH, W)
    halo = halo_ref[0, 0].astype(jnp.float32)   # (2, W)

    def col_shifts(a):
        # Zero-padded lane shifts via XLU rotation + boundary masks
        # (no materialized shifted copies).
        rows = a.shape[0]
        lane = jax.lax.broadcasted_iota(jnp.int32, (rows, W), 1)
        left = jnp.where(lane == 0, 0.0, pltpu.roll(a, 1, axis=1))       # a[:, j-1]
        right = jnp.where(lane == W - 1, 0.0, pltpu.roll(a, W - 1, axis=1))  # a[:, j+1]
        return left, right

    # Separable Sobel with constant weights (cross-correlation, like Conv2d):
    #   h1 = x[j-1] - x[j+1]            -> Gx = h1[i-1] + 2*h1[i] + h1[i+1]
    #   h2 = x[j-1] + 2*x[j] + x[j+1]   -> Gy = h2[i-1] - h2[i+1]
    x_l, x_r = col_shifts(x)
    h1 = x_l - x_r
    h2 = x_l + 2.0 * x + x_r

    hl, hr = col_shifts(halo)
    h1h = hl - hr                       # (2, W): h1 of [row above, row below]
    h2h = hl + 2.0 * halo + hr

    row = jax.lax.broadcasted_iota(jnp.int32, (TH, W), 0)
    top = row == 0
    bot = row == TH - 1
    # Sublane rotations, patching row 0 / row TH-1 from the halo rows.
    h1_up = jnp.where(top, h1h[0:1, :], pltpu.roll(h1, 1, axis=0))        # h1[i-1]
    h1_dn = jnp.where(bot, h1h[1:2, :], pltpu.roll(h1, TH - 1, axis=0))   # h1[i+1]
    h2_up = jnp.where(top, h2h[0:1, :], pltpu.roll(h2, 1, axis=0))        # h2[i-1]
    h2_dn = jnp.where(bot, h2h[1:2, :], pltpu.roll(h2, TH - 1, axis=0))   # h2[i+1]

    gx = h1_up + 2.0 * h1 + h1_dn
    gy = h2_up - h2_dn

    o_ref[0, 0] = gx.astype(o_ref.dtype)
    o_ref[0, 1] = gy.astype(o_ref.dtype)


def sobel_forward(x, *, tile_h=None, out_dtype=jnp.float32):
    """x: (N, 1, H, W) float -> (N, 2, H, W) out_dtype (== .view(-1,2,H,W))."""
    N, C, H, W = x.shape
    assert C == 1, "Sobel module expects a single input channel"

    tile_budget, vmem_limit = _vmem_budget()

    # Lane-dense layout: pad W up to a multiple of 128 (full-width vst).
    W_pad = _round_up(max(W, 128), 128)

    if tile_h is not None:
        assert tile_h % 8 == 0 and tile_h >= 8, "tile_h must be a multiple of 8"
        TH = tile_h
        RT = max(1, -(-H // TH))
    else:
        TH, RT = _plan_tiles(N, H, W_pad, tile_budget)
    H_pad = TH * RT

    # Zero-pad only when the tile grid / lane width requires it (<= 7 rows,
    # < 128 lanes of extra traffic); the padded rows/cols are also exactly the
    # conv zero padding for the last valid row/column.
    x3 = x[:, 0, :, :]                                       # (N, H, W)
    if (H_pad != H) or (W_pad != W):
        x3 = jnp.pad(x3, ((0, 0), (0, H_pad - H), (0, W_pad - W)))

    # Tiny halo-row table: for each row tile r, the image row just above
    # (r*TH - 1) and just below ((r+1)*TH), zero-filled at the border.
    zrow = jnp.zeros((N, 1, W_pad), dtype=x3.dtype)
    top_halo = jnp.concatenate(
        [zrow, x3[:, TH - 1::TH, :][:, :RT - 1, :]], axis=1)          # (N, RT, W_pad)
    bot_halo = jnp.concatenate(
        [x3[:, TH::TH, :][:, :RT - 1, :], zrow], axis=1)              # (N, RT, W_pad)
    halo = jnp.stack([top_halo, bot_halo], axis=2)                    # (N, RT, 2, W_pad)

    out_itemsize = jnp.dtype(out_dtype).itemsize
    in_bytes = x3.size * x3.dtype.itemsize + halo.size * halo.dtype.itemsize
    out_bytes = N * 2 * H_pad * W_pad * out_itemsize
    cost = pl.CostEstimate(
        flops=10 * N * H_pad * W_pad,
        transcendentals=0,
        bytes_accessed=in_bytes + out_bytes,
    )

    out = pl.pallas_call(
        _sobel_kernel,
        out_shape=jax.ShapeDtypeStruct((N, 2, H_pad, W_pad), out_dtype),
        grid_spec=pltpu.PrefetchScalarGridSpec(
            num_scalar_prefetch=0,
            grid=(N, RT),
            in_specs=[
                # Bulk row tile (auto-pipelined, double-buffered).
                pl.BlockSpec((1, TH, W_pad), lambda n, r: (n, r, 0)),
                # Two halo rows for this tile.
                pl.BlockSpec((1, 1, 2, W_pad), lambda n, r: (n, r, 0, 0)),
            ],
            out_specs=pl.BlockSpec((1, 2, TH, W_pad), lambda n, r: (n, 0, r, 0)),
        ),
        compiler_params=pltpu.CompilerParams(
            dimension_semantics=("parallel", "parallel"),
            vmem_limit_bytes=vmem_limit,
        ),
        cost_estimate=cost,
    )(x3, halo)

    if (H_pad != H) or (W_pad != W):
        out = out[:, :, :H, :W]
    # PyTorch: out.contiguous().view(-1, 2, H, W) -- already (N, 2, H, W).
    return out


def _reference(x):
    """Plain-JAX reference (lax conv) for a correctness check."""
    w = _sobel_weights()
    return jax.lax.conv_general_dilated(
        x.astype(jnp.float32), w, window_strides=(1, 1),
        padding=((1, 1), (1, 1)),
        dimension_numbers=("NCHW", "OIHW", "NCHW"))


if __name__ == "__main__":
    key = jax.random.PRNGKey(0)

    # Shape implied by the module: NCHW with C == 1.
    x = jax.random.normal(key, (2, 1, 16, 16), dtype=jnp.float32)
    out = jax.block_until_ready(sobel_forward(x))
    ref = _reference(x)
    assert out.shape == (2, 2, 16, 16)
    assert jnp.allclose(out, ref, atol=1e-4, rtol=1e-4), \
        "Pallas Sobel mismatch vs reference (single tile)"

    # Exercise the row-tiling + halo path (still small/fast).
    x2 = jax.random.normal(jax.random.PRNGKey(0), (2, 1, 32, 128),
                           dtype=jnp.float32)
    out2 = jax.block_until_ready(sobel_forward(x2, tile_h=8))
    ref2 = _reference(x2)
    assert jnp.allclose(out2, ref2, atol=1e-4, rtol=1e-4), \
        "Pallas Sobel mismatch vs reference (tiled + halo)"

    # Awkward H/W: exercises H/W padding, partial-row handling and the
    # ">= 2 grid steps when N == 1" path.
    x3 = jax.random.normal(jax.random.PRNGKey(0), (1, 1, 24, 48),
                           dtype=jnp.float32)
    out3 = jax.block_until_ready(sobel_forward(x3))
    ref3 = _reference(x3)
    assert out3.shape == (1, 2, 24, 48)
    assert jnp.allclose(out3, ref3, atol=1e-4, rtol=1e-4), \
        "Pallas Sobel mismatch vs reference (padded H/W)"

    print("KERNEL_OK")
</pallas_src>

<mosaic_0001>
module attributes {stable_mosaic.version = 11 : i64} {
  func.func @_sobel_kernel(%arg0: i32, %arg1: i32, %arg2: memref<1x16x128xf32, #tpu.memory_space<vmem>>, %arg3: memref<1x1x2x128xf32, #tpu.memory_space<vmem>>, %arg4: memref<1x2x16x128xf32, #tpu.memory_space<vmem>>) attributes {dimension_semantics = [#tpu.dimension_semantics<parallel>, #tpu.dimension_semantics<parallel>], iteration_bounds = array<i64: 2, 1>, scalar_prefetch = 0 : i64, scratch_operands = 0 : i64, tpu.core_type = #tpu.core_type<tc>, window_params = [{transform_indices = @transform_0, window_bounds = array<i64: 1, 16, 128>}, {transform_indices = @transform_1, window_bounds = array<i64: 1, 1, 2, 128>}, {transform_indices = @transform_2, window_bounds = array<i64: 1, 2, 16, 128>}]} {
    %c0 = arith.constant 0 : index
    %c0_0 = arith.constant 0 : index
    %c0_1 = arith.constant 0 : index
    %0 = vector.load %arg2[%c0, %c0_0, %c0_1] : memref<1x16x128xf32, #tpu.memory_space<vmem>>, vector<1x16x128xf32>
    %1 = vector.shape_cast %0 : vector<1x16x128xf32> to vector<16x128xf32>
    %c0_2 = arith.constant 0 : index
    %c0_3 = arith.constant 0 : index
    %c0_4 = arith.constant 0 : index
    %c0_5 = arith.constant 0 : index
    %2 = vector.load %arg3[%c0_2, %c0_3, %c0_4, %c0_5] : memref<1x1x2x128xf32, #tpu.memory_space<vmem>>, vector<1x1x2x128xf32>
    %3 = vector.shape_cast %2 : vector<1x1x2x128xf32> to vector<2x128xf32>
    %4 = tpu.iota {dimensions = array<i32: 1>} : vector<16x128xi32>
    %c0_i32 = arith.constant 0 : i32
    %5 = vector.broadcast %c0_i32 : i32 to vector<16x128xi32>
    %6 = arith.cmpi eq, %4, %5 : vector<16x128xi32>
    %c1_i32 = arith.constant 1 : i32
    %7 = tpu.dynamic_rotate %1 by %c1_i32 dim 1 : vector<16x128xf32>, i32 -> vector<16x128xf32>
    %cst = arith.constant 0.000000e+00 : f32
    %8 = vector.broadcast %cst : f32 to vector<16x128xf32>
    %9 = arith.select %6, %8, %7 : vector<16x128xi1>, vector<16x128xf32>
    %c127_i32 = arith.constant 127 : i32
    %10 = vector.broadcast %c127_i32 : i32 to vector<16x128xi32>
    %11 = arith.cmpi eq, %4, %10 : vector<16x128xi32>
    %c127_i32_6 = arith.constant 127 : i32
    %12 = tpu.dynamic_rotate %1 by %c127_i32_6 dim 1 : vector<16x128xf32>, i32 -> vector<16x128xf32>
    %cst_7 = arith.constant 0.000000e+00 : f32
    %13 = vector.broadcast %cst_7 : f32 to vector<16x128xf32>
    %14 = arith.select %11, %13, %12 : vector<16x128xi1>, vector<16x128xf32>
    %15 = arith.subf %9, %14 : vector<16x128xf32>
    %cst_8 = arith.constant 2.000000e+00 : f32
    %16 = vector.broadcast %cst_8 : f32 to vector<16x128xf32>
    %17 = arith.mulf %16, %1 : vector<16x128xf32>
    %18 = arith.addf %9, %17 : vector<16x128xf32>
    %19 = arith.addf %18, %14 : vector<16x128xf32>
    %20 = tpu.iota {dimensions = array<i32: 1>} : vector<2x128xi32>
    %c0_i32_9 = arith.constant 0 : i32
    %21 = vector.broadcast %c0_i32_9 : i32 to vector<2x128xi32>
    %22 = arith.cmpi eq, %20, %21 : vector<2x128xi32>
    %c1_i32_10 = arith.constant 1 : i32
    %23 = tpu.dynamic_rotate %3 by %c1_i32_10 dim 1 : vector<2x128xf32>, i32 -> vector<2x128xf32>
    %cst_11 = arith.constant 0.000000e+00 : f32
    %24 = vector.broadcast %cst_11 : f32 to vector<2x128xf32>
    %25 = arith.select %22, %24, %23 : vector<2x128xi1>, vector<2x128xf32>
    %c127_i32_12 = arith.constant 127 : i32
    %26 = vector.broadcast %c127_i32_12 : i32 to vector<2x128xi32>
    %27 = arith.cmpi eq, %20, %26 : vector<2x128xi32>
    %c127_i32_13 = arith.constant 127 : i32
    %28 = tpu.dynamic_rotate %3 by %c127_i32_13 dim 1 : vector<2x128xf32>, i32 -> vector<2x128xf32>
    %cst_14 = arith.constant 0.000000e+00 : f32
    %29 = vector.broadcast %cst_14 : f32 to vector<2x128xf32>
    %30 = arith.select %27, %29, %28 : vector<2x128xi1>, vector<2x128xf32>
    %31 = arith.subf %25, %30 : vector<2x128xf32>
    %cst_15 = arith.constant 2.000000e+00 : f32
    %32 = vector.broadcast %cst_15 : f32 to vector<2x128xf32>
    %33 = arith.mulf %32, %3 : vector<2x128xf32>
    %34 = arith.addf %25, %33 : vector<2x128xf32>
    %35 = arith.addf %34, %30 : vector<2x128xf32>
    %36 = tpu.iota {dimensions = array<i32: 0>} : vector<16x128xi32>
    %c0_i32_16 = arith.constant 0 : i32
    %37 = vector.broadcast %c0_i32_16 : i32 to vector<16x128xi32>
    %38 = arith.cmpi eq, %36, %37 : vector<16x128xi32>
    %c15_i32 = arith.constant 15 : i32
    %39 = vector.broadcast %c15_i32 : i32 to vector<16x128xi32>
    %40 = arith.cmpi eq, %36, %39 : vector<16x128xi32>
    %41 = vector.extract_strided_slice %31 {offsets = [0, 0], sizes = [1, 128], strides = [1, 1]} : vector<2x128xf32> to vector<1x128xf32>
    %c1_i32_17 = arith.constant 1 : i32
    %42 = tpu.dynamic_rotate %15 by %c1_i32_17 dim 0 : vector<16x128xf32>, i32 -> vector<16x128xf32>
    %43 = vector.shape_cast %41 : vector<1x128xf32> to vector<1x128xf32>
    %44 = vector.broadcast %43 : vector<1x128xf32> to vector<16x128xf32>
    %45 = arith.select %38, %44, %42 : vector<16x128xi1>, vector<16x128xf32>
    %46 = vector.extract_strided_slice %31 {offsets = [1, 0], sizes = [1, 128], strides = [1, 1]} : vector<2x128xf32> to vector<1x128xf32>
    %c15_i32_18 = arith.constant 15 : i32
    %47 = tpu.dynamic_rotate %15 by %c15_i32_18 dim 0 : vector<16x128xf32>, i32 -> vector<16x128xf32>
    %48 = vector.shape_cast %46 : vector<1x128xf32> to vector<1x128xf32>
    %49 = vector.broadcast %48 : vector<1x128xf32> to vector<16x128xf32>
    %50 = arith.select %40, %49, %47 : vector<16x128xi1>, vector<16x128xf32>
    %51 = vector.extract_strided_slice %35 {offsets = [0, 0], sizes = [1, 128], strides = [1, 1]} : vector<2x128xf32> to vector<1x128xf32>
    %c1_i32_19 = arith.constant 1 : i32
    %52 = tpu.dynamic_rotate %19 by %c1_i32_19 dim 0 : vector<16x128xf32>, i32 -> vector<16x128xf32>
    %53 = vector.shape_cast %51 : vector<1x128xf32> to vector<1x128xf32>
    %54 = vector.broadcast %53 : vector<1x128xf32> to vector<16x128xf32>
    %55 = arith.select %38, %54, %52 : vector<16x128xi1>, vector<16x128xf32>
    %56 = vector.extract_strided_slice %35 {offsets = [1, 0], sizes = [1, 128], strides = [1, 1]} : vector<2x128xf32> to vector<1x128xf32>
    %c15_i32_20 = arith.constant 15 : i32
    %57 = tpu.dynamic_rotate %19 by %c15_i32_20 dim 0 : vector<16x128xf32>, i32 -> vector<16x128xf32>
    %58 = vector.shape_cast %56 : vector<1x128xf32> to vector<1x128xf32>
    %59 = vector.broadcast %58 : vector<1x128xf32> to vector<16x128xf32>
    %60 = arith.select %40, %59, %57 : vector<16x128xi1>, vector<16x128xf32>
    %cst_21 = arith.constant 2.000000e+00 : f32
    %61 = vector.broadcast %cst_21 : f32 to vector<16x128xf32>
    %62 = arith.mulf %61, %15 : vector<16x128xf32>
    %63 = arith.addf %45, %62 : vector<16x128xf32>
    %64 = arith.addf %63, %50 : vector<16x128xf32>
    %65 = arith.subf %55, %60 : vector<16x128xf32>
    %c0_22 = arith.constant 0 : index
    %c0_23 = arith.constant 0 : index
    %c0_24 = arith.constant 0 : index
    %c0_25 = arith.constant 0 : index
    %66 = vector.load %arg4[%c0_22, %c0_23, %c0_24, %c0_25] : memref<1x2x16x128xf32, #tpu.memory_space<vmem>>, vector<1x1x16x128xf32>
    %67 = vector.shape_cast %66 : vector<1x1x16x128xf32> to vector<16x128xf32>
    %68 = vector.shape_cast %64 : vector<16x128xf32> to vector<1x1x16x128xf32>
    tpu.vector_store %arg4[%c0_22, %c0_23, %c0_24, %c0_25], %68 {strides = array<i32>} : memref<1x2x16x128xf32, #tpu.memory_space<vmem>>, vector<1x1x16x128xf32>,
    %c0_26 = arith.constant 0 : index
    %c1 = arith.constant 1 : index
    %c0_27 = arith.constant 0 : index
    %c0_28 = arith.constant 0 : index
    %69 = vector.load %arg4[%c0_26, %c1, %c0_27, %c0_28] : memref<1x2x16x128xf32, #tpu.memory_space<vmem>>, vector<1x1x16x128xf32>
    %70 = vector.shape_cast %69 : vector<1x1x16x128xf32> to vector<16x128xf32>
    %71 = vector.shape_cast %65 : vector<16x128xf32> to vector<1x1x16x128xf32>
    tpu.vector_store %arg4[%c0_26, %c1, %c0_27, %c0_28], %71 {strides = array<i32>} : memref<1x2x16x128xf32, #tpu.memory_space<vmem>>, vector<1x1x16x128xf32>,
    return
  }
  func.func @transform_0(%arg0: i32, %arg1: i32) -> (i32, i32, i32) {
    %c0_i32 = arith.constant 0 : i32
    %c0_i32_0 = arith.constant 0 : i32
    return %arg0, %arg1, %c0_i32 : i32, i32, i32
  }
  func.func @transform_1(%arg0: i32, %arg1: i32) -> (i32, i32, i32, i32) {
    %c0_i32 = arith.constant 0 : i32
    %c0_i32_0 = arith.constant 0 : i32
    %c0_i32_1 = arith.constant 0 : i32
    return %arg0, %arg1, %c0_i32, %c0_i32_0 : i32, i32, i32, i32
  }
  func.func @transform_2(%arg0: i32, %arg1: i32) -> (i32, i32, i32, i32) {
    %c0_i32 = arith.constant 0 : i32
    %c0_i32_0 = arith.constant 0 : i32
    %c0_i32_1 = arith.constant 0 : i32
    return %arg0, %c0_i32, %arg1, %c0_i32_0 : i32, i32, i32, i32
  }
}

</mosaic_0001>

<llo_original>
// kernel: tpu_custom_call.1
$region0: #{tpu_custom_call.1}
  #allocation0 [shape = 'u32[]', space=smem, size = 0x4, offset = 0x4, fixed_abs, tag = 'smem constant byte address 0x4 - core index']
  #allocation1 [shape = 'u32[72,128]{1,0:T(1,128)}', space=vmem, size = 0x9000, scoped, tag = 'internal scratch']
  %s0 = inlined_call_operand.hbm [shape: f32[2,16,128], index: 0, kind: input, shape index: {}]
  %s1 = inlined_call_operand.hbm [shape: f32[2,1,2,128], index: 1, kind: input, shape index: {}]
  %s2 = inlined_call_operand.hbm [shape: f32[2,2,16,128], index: 2, kind: output, shape index: {}]
  %s3 = sld [smem:[#allocation0]]
  $region49: #{tpu_custom_call.1} parent=0
    _
  %s5 = ssub.s32 1, %s3
  %s6 = scalar_select 0, %s5, %s3
  $region1: #{tpu_custom_call.1} parent=0
    #allocation2 [shape = 'u8[16384]{0}', space=vmem, size = 0x4000, scoped, tag = 'input window, operand 0']
    #allocation3 [shape = 's32[2]{0}', space=sflag, size = 0x8, scoped, tag = 'scoped memory for tpu_custom_call.1']
    #allocation4 [shape = 's32[2]{0}', space=sflag, size = 0x8, scoped, tag = 'scoped memory for tpu_custom_call.1']
    #allocation5 [shape = 'u8[2048]{0}', space=vmem, size = 0x800, scoped, tag = 'input window, operand 1']
    #allocation6 [shape = 's32[2]{0}', space=sflag, size = 0x8, scoped, tag = 'scoped memory for tpu_custom_call.1']
    #allocation7 [shape = 'u8[32768]{0}', space=vmem, size = 0x8000, scoped, tag = 'output window, operand 0']
    %7 = vsyncpa [#allocation3], 0
    %s8 = scalar_lea.sflag [#allocation3], 1
    %9 = vsyncpa %s8, 0
    %10 = vsyncpa [#allocation6], 0
    %s11 = scalar_lea.sflag [#allocation6], 1
    %12 = vsyncpa %s11, 0
    %13 = vsyncpa [#allocation4], 0
    %s14 = scalar_lea.sflag [#allocation4], 1
    %15 = vsyncpa %s14, 0
    loop: start=0, step=1, limit=4
    $region2: #{tpu_custom_call.1} parent=1 // loop_pre_header
      _
    $region3: #{tpu_custom_call.1} parent=1 // loop_header
      %s17 = sphi 0, %s21
      %p18 = scmp.ge.s32.totalorder %s17, 4
      %s24 = sphi 0, %s36
      %s25 = sphi 0, %s32
      %s26 = sphi 0, %s24
      %s27 = sphi 0, %s25
      %s28 = sphi 0, %s26
      %s29 = sphi 0, %s27
      %s41 = sphi 0, %s43
      %s44 = sphi 0, %s41
      %s45 = sphi 0, %s44
      %s61 = sphi 0, %s45
      %s69 = sphi 0, %s71
      %s72 = sphi 0, %s69
      %s73 = sphi 0, %s72
      %s89 = sphi 0, %s73
      %s97 = sphi 0, %s99
      %s100 = sphi 0, %s97
      %s101 = sphi 0, %s100
      %s117 = sphi 0, %s101
    $region4: #{tpu_custom_call.1} parent=1 // loop_header_branch
      %20 = sbr.rel (%p18) target = $region8
    $region5: #{tpu_custom_call.1} parent=1 // loop_body
      %s22 = ssub.s32 %s17, 1
      %s23 = ssub.s32 %s17, 2
      %s30 = sadd.s32 1, %s25
      %p31 = scmp.ge.s32.totalorder %s30, 1
      %s32 = scalar_select %p31, 0, %s30
      %s33 = sadd.s32 1, %s24
      %s34 = scalar_select %p31, %s33, %s24
      %p35 = scmp.ge.s32.totalorder %s34, 2
      %s36 = scalar_select %p35, 0, %s34
      %s37 = ssub.s32 %s24, %s36
      %s38 = ssub.s32 %s25, %s32
      %s39 = sor.u32 %s37, %s38
      %p40 = scmp.eq.s32.totalorder %s39, 0
      %s42 = sadd.s32 %s41, 1
      %s43 = scalar_select %p40, %s41, %s42
      %p46 = pneg %p40
      %p47 = scmp.eq.s32.totalorder %s17, 1
      %p48 = por %p46, %p47
      %p49 = scmp.ne.s32.totalorder %s41, %s44
      %p50 = scmp.eq.s32.totalorder %s17, 0
      %p51 = por %p49, %p50
      %p52 = scmp.ne.s32.totalorder %s41, %s44
      %p53 = scmp.eq.s32.totalorder %s22, 1
      %p54 = por %p52, %p53
      %p55 = scmp.ne.s32.totalorder %s44, %s45
      %p56 = scmp.eq.s32.totalorder %s22, 0
      %p57 = por %p55, %p56
      %p58 = scmp.ne.s32.totalorder %s44, %s45
      %p59 = scmp.eq.s32.totalorder %s23, 1
      %p60 = por %p58, %p59
      %p62 = scmp.ne.s32.totalorder %s45, %s61
      %p63 = scmp.eq.s32.totalorder %s23, 0
      %p64 = por %p62, %p63
      %s65 = ssub.s32 %s24, %s36
      %s66 = ssub.s32 %s25, %s32
      %s67 = sor.u32 %s65, %s66
      %p68 = scmp.eq.s32.totalorder %s67, 0
      %s70 = sadd.s32 %s69, 1
      %s71 = scalar_select %p68, %s69, %s70
      %p74 = pneg %p68
      %p75 = scmp.eq.s32.totalorder %s17, 1
      %p76 = por %p74, %p75
      %p77 = scmp.ne.s32.totalorder %s69, %s72
      %p78 = scmp.eq.s32.totalorder %s17, 0
      %p79 = por %p77, %p78
      %p80 = scmp.ne.s32.totalorder %s69, %s72
      %p81 = scmp.eq.s32.totalorder %s22, 1
      %p82 = por %p80, %p81
      %p83 = scmp.ne.s32.totalorder %s72, %s73
      %p84 = scmp.eq.s32.totalorder %s22, 0
      %p85 = por %p83, %p84
      %p86 = scmp.ne.s32.totalorder %s72, %s73
      %p87 = scmp.eq.s32.totalorder %s23, 1
      %p88 = por %p86, %p87
      %p90 = scmp.ne.s32.totalorder %s73, %s89
      %p91 = scmp.eq.s32.totalorder %s23, 0
      %p92 = por %p90, %p91
      %s93 = ssub.s32 %s24, %s36
      %s94 = ssub.s32 %s25, %s32
      %s95 = sor.u32 %s93, %s94
      %p96 = scmp.eq.s32.totalorder %s95, 0
      %s98 = sadd.s32 %s97, 1
      %s99 = scalar_select %p96, %s97, %s98
      %p102 = pneg %p96
      %p103 = scmp.eq.s32.totalorder %s17, 1
      %p104 = por %p102, %p103
      %p105 = scmp.ne.s32.totalorder %s97, %s100
      %p106 = scmp.eq.s32.totalorder %s17, 0
      %p107 = por %p105, %p106
      %p108 = scmp.ne.s32.totalorder %s97, %s100
      %p109 = scmp.eq.s32.totalorder %s22, 1
      %p110 = por %p108, %p109
      %p111 = scmp.ne.s32.totalorder %s100, %s101
      %p112 = scmp.eq.s32.totalorder %s22, 0
      %p113 = por %p111, %p112
      %p114 = scmp.ne.s32.totalorder %s100, %s101
      %p115 = scmp.eq.s32.totalorder %s23, 1
      %p116 = por %p114, %p115
      %p118 = scmp.ne.s32.totalorder %s101, %s117
      %p119 = scmp.eq.s32.totalorder %s23, 0
      %p120 = por %p118, %p119
      %p121 = scmp.le.s32.totalorder 1, %s17
      %p122 = scmp.lt.s32.totalorder %s17, 3
      %p123 = pnand %p121, %p122
      %p124 = pneg %p123
      // Predicated region
      $region9: #{tpu_custom_call.1} parent=5 // pred_check
        _
      $region10: #{tpu_custom_call.1} parent=5 // pred_check_branch
        %126 = sbr.rel (%p123) target = $region12
      $region11: #{tpu_custom_call.1} parent=5 // pred_region
        %s127 = ssub.s32 %s17, 1
      $region12: #{tpu_custom_call.1} parent=5 // pred_fallthru
        _
      %p128 = scmp.lt.s32.totalorder %s17, 2
      // Predicated region
      $region13: #{tpu_custom_call.1} parent=5 // pred_check
        %p129 = pneg %p128
      $region14: #{tpu_custom_call.1} parent=5 // pred_check_branch
        %131 = sbr.rel (%p129) target = $region16
      $region15: #{tpu_custom_call.1} parent=5 // pred_region
        // Predicated region
        $region17: #{tpu_custom_call.1} parent=15 // pred_check
          %p132 = pneg %p51
        $region18: #{tpu_custom_call.1} parent=15 // pred_check_branch
          %134 = sbr.rel (%p132) target = $region20
        $region19: #{tpu_custom_call.1} parent=15 // pred_region
          %s135 = sand.u32 %s41, 1
          %s136 = scalar_lea.sflag [#allocation3], %s135
          %s137 = sand.u32 %s41, 1
          %s138 = smul.addr %s137, 16
          %s139 = scalar_lea.vmem [#allocation2], %s138
          %s140 = smul.u32 2, %s25
          %142 = vsyncadd %s136, 0
          %s143 = smul.addr %s24, 2
          %s144 = sadd.s32 %s140, %s143
          %s145 = smul.addr %s144, 8
          %s146 = scalar_lea.hbm %s0, %s145
          %s147 = sshll.u32 %s146, 4
          %s148 = int_to_ptr.hbm [resolvable:$true] %s147
          %s149 = sshll.u32 %s139, 4
          %s150 = int_to_ptr.vmem [resolvable:$true] %s149
          %155 = dma.hbm_to_vmem [thread:$0]  %s148, 256, %s150, %s136, 128, 128, 8
        $region20: #{tpu_custom_call.1} parent=15 // pred_fallthru
          _
        // Predicated region
        $region21: #{tpu_custom_call.1} parent=15 // pred_check
          %p156 = pneg %p79
        $region22: #{tpu_custom_call.1} parent=15 // pred_check_branch
          %158 = sbr.rel (%p156) target = $region24
        $region23: #{tpu_custom_call.1} parent=15 // pred_region
          %s159 = sand.u32 %s69, 1
          %s160 = scalar_lea.sflag [#allocation6], %s159
          %s161 = sand.u32 %s69, 1
          %s162 = smul.addr %s161, 2
          %s163 = scalar_lea.vmem [#allocation5], %s162
          %165 = vsyncadd %s160, 0
          %s166 = sadd.s32 %s25, %s24
          %s167 = smul.addr %s166, 2
          %s168 = scalar_lea.hbm %s1, %s167
          %s170 = sshll.u32 %s168, 4
          %s171 = int_to_ptr.hbm [resolvable:$true] %s170
          %s172 = sshll.u32 %s163, 4
          %s173 = int_to_ptr.vmem [resolvable:$true] %s172
          %175 = dma.hbm_to_vmem [thread:$0]  %s171, 32, %s173, %s160
        $region24: #{tpu_custom_call.1} parent=15 // pred_fallthru
          _
      $region16: #{tpu_custom_call.1} parent=5 // pred_fallthru
        _
      %p176 = scmp.le.s32.totalorder 1, %s17
      %p177 = scmp.lt.s32.totalorder %s17, 3
      %p178 = pnand %p176, %p177
      %p179 = pneg %p178
      // Predicated region
      $region25: #{tpu_custom_call.1} parent=5 // pred_check
        _
      $region26: #{tpu_custom_call.1} parent=5 // pred_check_branch
        %181 = sbr.rel (%p178) target = $region28
      $region27: #{tpu_custom_call.1} parent=5 // pred_region
        %s182 = ssub.s32 %s17, 1
        %s183 = sand.u32 %s44, 1
        %s184 = scalar_lea.sflag [#allocation3], %s183
        %s185 = sand.u32 %s44, 1
        %s186 = smul.addr %s185, 16
        %s187 = scalar_lea.vmem [#allocation2], %s186
        // Predicated region
        $region29: #{tpu_custom_call.1} parent=27 // pred_check
          %p188 = pneg %p57
        $region30: #{tpu_custom_call.1} parent=27 // pred_check_branch
          %190 = sbr.rel (%p188) target = $region32
        $region31: #{tpu_custom_call.1} parent=27 // pred_region
          %192 = dma.done %s184, 256
        $region32: #{tpu_custom_call.1} parent=27 // pred_fallthru
          _
        %s193 = sand.u32 %s72, 1
        %s194 = scalar_lea.sflag [#allocation6], %s193
        %s195 = sand.u32 %s72, 1
        %s196 = smul.addr %s195, 2
        %s197 = scalar_lea.vmem [#allocation5], %s196
        // Predicated region
        $region33: #{tpu_custom_call.1} parent=27 // pred_check
          %p198 = pneg %p85
        $region34: #{tpu_custom_call.1} parent=27 // pred_check_branch
          %200 = sbr.rel (%p198) target = $region36
        $region35: #{tpu_custom_call.1} parent=27 // pred_region
          %202 = dma.done %s194, 32
        $region36: #{tpu_custom_call.1} parent=27 // pred_fallthru
          _
        %s203 = sand.u32 %s44, 1
        %s204 = scalar_lea.sflag [#allocation3], %s203
        %s205 = sand.u32 %s44, 1
        %s206 = smul.addr %s205, 16
        %s207 = scalar_lea.vmem [#allocation2], %s206
        %p208 = pneg %p57
        %p209 = pneg %p54
        %s210 = sand.u32 %s72, 1
        %s211 = scalar_lea.sflag [#allocation6], %s210
        %s212 = sand.u32 %s72, 1
        %s213 = smul.addr %s212, 2
        %s214 = scalar_lea.vmem [#allocation5], %s213
        %p215 = pneg %p85
        %p216 = pneg %p82
        %p217 = pneg %p113
        %p218 = pneg %p110
        %s219 = sand.u32 %s100, 1
        %s220 = scalar_lea.sflag [#allocation4], %s219
        %s221 = sand.u32 %s100, 1
        %s222 = smul.addr %s221, 32
        %s223 = scalar_lea.vmem [#allocation7], %s222
        %s224 = smul.u32 2, %s27
        %s225 = smul.u32 2, %s27
        %v226 = vld [vmem:[%s187] sm:$0xff]
        %v227 = vld [vmem:[%s187 + $0x8] sm:$0xff]
        %v228 = vld [vmem:[%s197] sm:$0x3]
        %v229 = vlaneseq
        %v230 = vand.u32 %v229, 127
        %vm231 = vcmp.eq.s32.totalorder %v230, 0
        %232 = vrot.lane.b32.xlu0 %v226, 1
        %v233 = vpop.permute.xlu0 %232
        %234 = vrot.lane.b32.xlu0 %v227, 1
        %v235 = vpop.permute.xlu0 %234
        %v236 = vsel %vm231, 0.0, %v233
        %v237 = vsel %vm231, 0.0, %v235
        %vm238 = vcmp.eq.s32.totalorder %v230, 127
        %239 = vrot.lane.b32.xlu0 %v226, 127
        %v240 = vpop.permute.xlu0 %239
        %241 = vrot.lane.b32.xlu0 %v227, 127
        %v242 = vpop.permute.xlu0 %241
        %v243 = vsel %vm238, 0.0, %v240
        %v244 = vsel %vm238, 0.0, %v242
        %v245 = vsub.f32 %v236, %v243
        %v246 = vsub.f32 %v237, %v244
        %v247 = vmul.f32 %v226, 2.0
        %v248 = vmul.f32 %v227, 2.0
        %v249 = vadd.f32 %v236, %v247
        %v250 = vadd.f32 %v237, %v248
        %v251 = vadd.f32 %v249, %v243
        %v252 = vadd.f32 %v250, %v244
        %253 = vrot.lane.b32.xlu0 %v228, 1
        %v254 = vpop.permute.xlu0 %253
        %v255 = vsel %vm231, 0.0, %v254
        %256 = vrot.lane.b32.xlu0 %v228, 127
        %v257 = vpop.permute.xlu0 %256
        %v258 = vsel %vm238, 0.0, %v257
        %v259 = vsub.f32 %v255, %v258
        %v260 = vmul.f32 %v228, 2.0
        %v261 = vadd.f32 %v255, %v260
        %v262 = vadd.f32 %v261, %v258
        %v263 = vlaneseq
        %v264 = vshrl.u32 %v263, 7
        %v265 = vadd.s32 %v264, 8
        %vm266 = vcmp.eq.s32.totalorder %v264, 0
        %vm267 = vcmp.eq.s32.totalorder %v265, 0
        %vm268 = vcmp.eq.s32.totalorder %v264, 15
        %vm269 = vcmp.eq.s32.totalorder %v265, 15
        %v270 = vrot.slane %v245, 7
        %v271 = vrot.slane %v246, 7
        %vm272 = vcmp.lt.s32.totalorder %v264, 1
        %v273 = vsel %vm272, %v270, %v271
        %v274 = vsel %vm272, %v271, %v270
        %v275 = vperm.slane %v259, 0
        %v276 = vsel %vm266, %v275, %v274
        %v277 = vsel %vm267, %v275, %v273
        %v278 = vrot.slane %v245, 1
        %v279 = vrot.slane %v246, 1
        %vm280 = vcmp.lt.s32.totalorder %v264, 7
        %v281 = vsel %vm280, %v278, %v279
        %v282 = vsel %vm280, %v279, %v278
        %v283 = vperm.slane %v259, 1
        %v284 = vsel %vm268, %v283, %v281
        %v285 = vsel %vm269, %v283, %v282
        %v286 = vrot.slane %v251, 7
        %v287 = vrot.slane %v252, 7
        %v288 = vsel %vm272, %v286, %v287
        %v289 = vsel %vm272, %v287, %v286
        %v290 = vperm.slane %v262, 0
        %v291 = vsel %vm266, %v290, %v289
        %v292 = vsel %vm267, %v290, %v288
        %v293 = vrot.slane %v251, 1
        %v294 = vrot.slane %v252, 1
        %v295 = vsel %vm280, %v293, %v294
        %v296 = vsel %vm280, %v294, %v293
        %v297 = vperm.slane %v262, 1
        %v298 = vsel %vm268, %v297, %v295
        %v299 = vsel %vm269, %v297, %v296
        %v300 = vmul.f32 %v245, 2.0
        %v301 = vmul.f32 %v246, 2.0
        %v302 = vadd.f32 %v276, %v300
        %v303 = vadd.f32 %v277, %v301
        %v304 = vadd.f32 %v302, %v284
        %v305 = vadd.f32 %v303, %v285
        %v306 = vsub.f32 %v291, %v298
        %v307 = vsub.f32 %v292, %v299
        %308 = vst [vmem:[%s223] sm:$0xff] %v304
        %309 = vst [vmem:[%s223 + $0x8] sm:$0xff] %v305
        %s310 = scalar_lea.vmem %s223, 16 [#allocation7]
        %311 = vst [vmem:[%s310] sm:$0xff] %v306
        %312 = vst [vmem:[%s310 + $0x8] sm:$0xff] %v307
        %s313 = sand.u32 %s100, 1
        %s314 = scalar_lea.sflag [#allocation4], %s313
        %s315 = sand.u32 %s100, 1
        %s316 = smul.addr %s315, 32
        %s317 = scalar_lea.vmem [#allocation7], %s316
        // Predicated region
        $region37: #{tpu_custom_call.1} parent=27 // pred_check
          %p318 = pneg %p110
        $region38: #{tpu_custom_call.1} parent=27 // pred_check_branch
          %320 = sbr.rel (%p318) target = $region40
        $region39: #{tpu_custom_call.1} parent=27 // pred_region
          %s321 = smul.u32 2, %s27
          %323 = vsyncadd %s314, 0
          %s324 = smul.addr %s26, 4
          %s325 = sadd.s32 %s321, %s324
          %s326 = smul.addr %s325, 8
          %s327 = scalar_lea.hbm %s2, %s326
          %s328 = sshll.u32 %s317, 4
          %s329 = int_to_ptr.vmem [resolvable:$true] %s328
          %s330 = sshll.u32 %s327, 4
          %s331 = int_to_ptr.hbm [resolvable:$true] %s330
          %336 = dma.vmem_to_hbm [thread:$0]  %s329, 512, %s331, %s314, 128, 128, 8
        $region40: #{tpu_custom_call.1} parent=27 // pred_fallthru
          _
      $region28: #{tpu_custom_call.1} parent=5 // pred_fallthru
        _
      %p337 = scmp.le.s32.totalorder 2, %s17
      // Predicated region
      $region41: #{tpu_custom_call.1} parent=5 // pred_check
        %p338 = pneg %p337
      $region42: #{tpu_custom_call.1} parent=5 // pred_check_branch
        %340 = sbr.rel (%p338) target = $region44
      $region43: #{tpu_custom_call.1} parent=5 // pred_region
        %s341 = ssub.s32 %s17, 2
        // Predicated region
        $region45: #{tpu_custom_call.1} parent=43 // pred_check
          %p342 = pneg %p116
        $region46: #{tpu_custom_call.1} parent=43 // pred_check_branch
          %344 = sbr.rel (%p342) target = $region48
        $region47: #{tpu_custom_call.1} parent=43 // pred_region
          %s345 = sand.u32 %s101, 1
          %s346 = scalar_lea.sflag [#allocation4], %s345
          %s347 = sand.u32 %s101, 1
          %s348 = smul.addr %s347, 32
          %s349 = scalar_lea.vmem [#allocation7], %s348
          %351 = dma.done %s346, 512
        $region48: #{tpu_custom_call.1} parent=43 // pred_fallthru
          _
      $region44: #{tpu_custom_call.1} parent=5 // pred_fallthru
        _
    $region6: #{tpu_custom_call.1} parent=1 // loop_footer
      %s21 = sadd.s32 1, %s17
    $region7: #{tpu_custom_call.1} parent=1 // loop_footer_branch
      %16 = sbr.rel target = $region3
    $region8: #{tpu_custom_call.1} parent=1 // loop_exit
      _
    %352 = vsyncpa [#allocation3], 1
    %s353 = scalar_lea.sflag [#allocation3], 1
    %354 = vsyncpa %s353, 1
    %355 = vsyncpa [#allocation6], 1
    %s356 = scalar_lea.sflag [#allocation6], 1
    %357 = vsyncpa %s356, 1
    %358 = vsyncpa [#allocation4], 1
    %s359 = scalar_lea.sflag [#allocation4], 1
    %360 = vsyncpa %s359, 1

</llo_original>
